<compile_context>
chip_gen: v7x
topology: tpu7x:2x2x1
jax: 0.10.0
libtpu: 0.0.40
codegen_flags: <defaults>
</compile_context>

<pallas_src>
import jax
import jax.numpy as jnp
from jax.experimental import pallas as pl
from jax.experimental.pallas import tpu as pltpu

HIDDEN = 16      # output_size in the PyTorch module
LANES = 128
SUBLANES = 8
TILE_ROWS = 512  # rows (of 128 lanes each) per grid step; 256 KiB f32 tile


def outernet_kernel(w1_ref, b1_ref, w2_ref, b2_ref, x_ref, o_ref):
    # w1/b1/w2: (HIDDEN,) f32 in SMEM, b2: (1,) f32 in SMEM.
    # x_ref/o_ref: (tile_rows, 128) f32 tiles in VMEM (batch is lane-dense).
    x = x_ref[...]                              # (tile_rows, 128)
    acc = jnp.zeros_like(x)
    # Unrolled loop over the 16 hidden units: scalar-broadcast FMA + ReLU.
    for h in range(HIDDEN):
        hact = jnp.maximum(x * w1_ref[h] + b1_ref[h], 0.0)
        acc = acc + hact * w2_ref[h]
    o_ref[...] = (acc + b2_ref[0]).astype(o_ref.dtype)


def outernet_forward(x, w1, b1, w2, b2, *, tile_rows=TILE_ROWS):
    """x: (B, 1) f32.  w1/b1/w2: 16 params each, b2: 1 param.  Returns (B, 1)."""
    B = x.shape[0]
    dtype = x.dtype

    # --- lane-dense packing: (B, 1) -> (R_pad, 128), R_pad % tile_rows == 0 ---
    rows = pl.cdiv(B, LANES)
    rows = ((rows + SUBLANES - 1) // SUBLANES) * SUBLANES      # sublane multiple
    tr = min(tile_rows, rows)
    rows_pad = ((rows + tr - 1) // tr) * tr                    # whole tiles
    total = rows_pad * LANES

    x_flat = x.reshape(-1)
    x_pad = jnp.zeros((total,), dtype).at[:B].set(x_flat).reshape(rows_pad, LANES)

    # Tiny weights go to SMEM (resident across grid steps, cheap scalar reads).
    w1s = w1.reshape(HIDDEN).astype(jnp.float32)
    b1s = b1.reshape(HIDDEN).astype(jnp.float32)
    w2s = w2.reshape(HIDDEN).astype(jnp.float32)
    b2s = b2.reshape(1).astype(jnp.float32)

    smem_spec = pl.BlockSpec(memory_space=pltpu.MemorySpace.SMEM)
    grid = (rows_pad // tr,)

    out_pad = pl.pallas_call(
        outernet_kernel,
        out_shape=jax.ShapeDtypeStruct((rows_pad, LANES), dtype),
        grid=grid,
        in_specs=[
            smem_spec,  # w1
            smem_spec,  # b1
            smem_spec,  # w2
            smem_spec,  # b2
            pl.BlockSpec((tr, LANES), lambda i: (i, 0)),   # x tiles
        ],
        out_specs=pl.BlockSpec((tr, LANES), lambda i: (i, 0)),
        compiler_params=pltpu.CompilerParams(
            dimension_semantics=("parallel",),
        ),
    )(w1s, b1s, w2s, b2s, x_pad)

    return out_pad.reshape(-1)[:B].reshape(B, 1)


def init_params(key, hidden=HIDDEN, dtype=jnp.float32):
    """Deterministic init mimicking nn.Linear's uniform(-1/sqrt(fan_in), ...)."""
    k1, k2, k3, k4 = jax.random.split(key, 4)
    # Linear(1, hidden): fan_in = 1 -> bound = 1.0
    w1 = jax.random.uniform(k1, (1, hidden), dtype, minval=-1.0, maxval=1.0)
    b1 = jax.random.uniform(k2, (1, hidden), dtype, minval=-1.0, maxval=1.0)
    # Linear(hidden, 1): fan_in = hidden -> bound = 1/sqrt(hidden)
    bound = 1.0 / (hidden ** 0.5)
    w2 = jax.random.uniform(k3, (1, hidden), dtype, minval=-bound, maxval=bound)
    b2 = jax.random.uniform(k4, (1, 1), dtype, minval=-bound, maxval=bound)
    return w1, b1, w2, b2


def reference_forward(x, w1, b1, w2, b2):
    """Plain-JAX reference matching the PyTorch forward."""
    h = jnp.maximum(x @ w1 + b1, 0.0)          # (B, H)
    return h @ w2.T + b2                        # (B, 1)


if __name__ == "__main__":
    key = jax.random.PRNGKey(0)
    kx, kx2, kp = jax.random.split(key, 3)

    w1, b1, w2, b2 = init_params(kp)

    # Small primary check (B = 8, matching the module's (B, 1) input shape).
    B = 8
    x = jax.random.normal(kx, (B, 1), dtype=jnp.float32)
    out = jax.block_until_ready(outernet_forward(x, w1, b1, w2, b2))
    ref = reference_forward(x, w1, b1, w2, b2)
    assert out.shape == (B, 1)
    assert jnp.allclose(out, ref, atol=1e-5, rtol=1e-5), (out, ref)

    # Secondary check with a batch that is not a multiple of 128 (exercises
    # the lane-dense padding / strip path).
    B2 = 300
    x2 = jax.random.normal(kx2, (B2, 1), dtype=jnp.float32)
    out2 = jax.block_until_ready(outernet_forward(x2, w1, b1, w2, b2))
    ref2 = reference_forward(x2, w1, b1, w2, b2)
    assert out2.shape == (B2, 1)
    assert jnp.allclose(out2, ref2, atol=1e-5, rtol=1e-5)

    print("KERNEL_OK")
</pallas_src>

<mosaic_0001>
module attributes {stable_mosaic.version = 11 : i64} {
  func.func @outernet_kernel(%arg0: i32, %arg1: memref<16xf32, #tpu.memory_space<smem>>, %arg2: memref<16xf32, #tpu.memory_space<smem>>, %arg3: memref<16xf32, #tpu.memory_space<smem>>, %arg4: memref<1xf32, #tpu.memory_space<smem>>, %arg5: memref<8x128xf32, #tpu.memory_space<vmem>>, %arg6: memref<8x128xf32, #tpu.memory_space<vmem>>) attributes {dimension_semantics = [#tpu.dimension_semantics<parallel>], iteration_bounds = array<i64: 1>, scalar_prefetch = 0 : i64, scratch_operands = 0 : i64, tpu.core_type = #tpu.core_type<tc>, window_params = [{transform_indices = @transform_0, window_bounds = array<i64: 16>}, {transform_indices = @transform_1, window_bounds = array<i64: 16>}, {transform_indices = @transform_2, window_bounds = array<i64: 16>}, {transform_indices = @transform_3, window_bounds = array<i64: 1>}, {transform_indices = @transform_4, window_bounds = array<i64: 8, 128>}, {transform_indices = @transform_5, window_bounds = array<i64: 8, 128>}]} {
    %c0 = arith.constant 0 : index
    %c0_0 = arith.constant 0 : index
    %0 = vector.load %arg5[%c0, %c0_0] : memref<8x128xf32, #tpu.memory_space<vmem>>, vector<8x128xf32>
    %cst = arith.constant 0.000000e+00 : f32
    %1 = vector.broadcast %cst : f32 to vector<8x128xf32>
    %c0_1 = arith.constant 0 : index
    %2 = memref.load %arg1[%c0_1] : memref<16xf32, #tpu.memory_space<smem>>
    %3 = vector.broadcast %2 : f32 to vector<8x128xf32>
    %4 = arith.mulf %0, %3 : vector<8x128xf32>
    %c0_2 = arith.constant 0 : index
    %5 = memref.load %arg2[%c0_2] : memref<16xf32, #tpu.memory_space<smem>>
    %6 = vector.broadcast %5 : f32 to vector<8x128xf32>
    %7 = arith.addf %4, %6 : vector<8x128xf32>
    %cst_3 = arith.constant 0.000000e+00 : f32
    %8 = vector.broadcast %cst_3 : f32 to vector<8x128xf32>
    %9 = arith.maximumf %7, %8 : vector<8x128xf32>
    %c0_4 = arith.constant 0 : index
    %10 = memref.load %arg3[%c0_4] : memref<16xf32, #tpu.memory_space<smem>>
    %11 = vector.broadcast %10 : f32 to vector<8x128xf32>
    %12 = arith.mulf %9, %11 : vector<8x128xf32>
    %13 = arith.addf %1, %12 : vector<8x128xf32>
    %c1 = arith.constant 1 : index
    %14 = memref.load %arg1[%c1] : memref<16xf32, #tpu.memory_space<smem>>
    %15 = vector.broadcast %14 : f32 to vector<8x128xf32>
    %16 = arith.mulf %0, %15 : vector<8x128xf32>
    %c1_5 = arith.constant 1 : index
    %17 = memref.load %arg2[%c1_5] : memref<16xf32, #tpu.memory_space<smem>>
    %18 = vector.broadcast %17 : f32 to vector<8x128xf32>
    %19 = arith.addf %16, %18 : vector<8x128xf32>
    %cst_6 = arith.constant 0.000000e+00 : f32
    %20 = vector.broadcast %cst_6 : f32 to vector<8x128xf32>
    %21 = arith.maximumf %19, %20 : vector<8x128xf32>
    %c1_7 = arith.constant 1 : index
    %22 = memref.load %arg3[%c1_7] : memref<16xf32, #tpu.memory_space<smem>>
    %23 = vector.broadcast %22 : f32 to vector<8x128xf32>
    %24 = arith.mulf %21, %23 : vector<8x128xf32>
    %25 = arith.addf %13, %24 : vector<8x128xf32>
    %c2 = arith.constant 2 : index
    %26 = memref.load %arg1[%c2] : memref<16xf32, #tpu.memory_space<smem>>
    %27 = vector.broadcast %26 : f32 to vector<8x128xf32>
    %28 = arith.mulf %0, %27 : vector<8x128xf32>
    %c2_8 = arith.constant 2 : index
    %29 = memref.load %arg2[%c2_8] : memref<16xf32, #tpu.memory_space<smem>>
    %30 = vector.broadcast %29 : f32 to vector<8x128xf32>
    %31 = arith.addf %28, %30 : vector<8x128xf32>
    %cst_9 = arith.constant 0.000000e+00 : f32
    %32 = vector.broadcast %cst_9 : f32 to vector<8x128xf32>
    %33 = arith.maximumf %31, %32 : vector<8x128xf32>
    %c2_10 = arith.constant 2 : index
    %34 = memref.load %arg3[%c2_10] : memref<16xf32, #tpu.memory_space<smem>>
    %35 = vector.broadcast %34 : f32 to vector<8x128xf32>
    %36 = arith.mulf %33, %35 : vector<8x128xf32>
    %37 = arith.addf %25, %36 : vector<8x128xf32>
    %c3 = arith.constant 3 : index
    %38 = memref.load %arg1[%c3] : memref<16xf32, #tpu.memory_space<smem>>
    %39 = vector.broadcast %38 : f32 to vector<8x128xf32>
    %40 = arith.mulf %0, %39 : vector<8x128xf32>
    %c3_11 = arith.constant 3 : index
    %41 = memref.load %arg2[%c3_11] : memref<16xf32, #tpu.memory_space<smem>>
    %42 = vector.broadcast %41 : f32 to vector<8x128xf32>
    %43 = arith.addf %40, %42 : vector<8x128xf32>
    %cst_12 = arith.constant 0.000000e+00 : f32
    %44 = vector.broadcast %cst_12 : f32 to vector<8x128xf32>
    %45 = arith.maximumf %43, %44 : vector<8x128xf32>
    %c3_13 = arith.constant 3 : index
    %46 = memref.load %arg3[%c3_13] : memref<16xf32, #tpu.memory_space<smem>>
    %47 = vector.broadcast %46 : f32 to vector<8x128xf32>
    %48 = arith.mulf %45, %47 : vector<8x128xf32>
    %49 = arith.addf %37, %48 : vector<8x128xf32>
    %c4 = arith.constant 4 : index
    %50 = memref.load %arg1[%c4] : memref<16xf32, #tpu.memory_space<smem>>
    %51 = vector.broadcast %50 : f32 to vector<8x128xf32>
    %52 = arith.mulf %0, %51 : vector<8x128xf32>
    %c4_14 = arith.constant 4 : index
    %53 = memref.load %arg2[%c4_14] : memref<16xf32, #tpu.memory_space<smem>>
    %54 = vector.broadcast %53 : f32 to vector<8x128xf32>
    %55 = arith.addf %52, %54 : vector<8x128xf32>
    %cst_15 = arith.constant 0.000000e+00 : f32
    %56 = vector.broadcast %cst_15 : f32 to vector<8x128xf32>
    %57 = arith.maximumf %55, %56 : vector<8x128xf32>
    %c4_16 = arith.constant 4 : index
    %58 = memref.load %arg3[%c4_16] : memref<16xf32, #tpu.memory_space<smem>>
    %59 = vector.broadcast %58 : f32 to vector<8x128xf32>
    %60 = arith.mulf %57, %59 : vector<8x128xf32>
    %61 = arith.addf %49, %60 : vector<8x128xf32>
    %c5 = arith.constant 5 : index
    %62 = memref.load %arg1[%c5] : memref<16xf32, #tpu.memory_space<smem>>
    %63 = vector.broadcast %62 : f32 to vector<8x128xf32>
    %64 = arith.mulf %0, %63 : vector<8x128xf32>
    %c5_17 = arith.constant 5 : index
    %65 = memref.load %arg2[%c5_17] : memref<16xf32, #tpu.memory_space<smem>>
    %66 = vector.broadcast %65 : f32 to vector<8x128xf32>
    %67 = arith.addf %64, %66 : vector<8x128xf32>
    %cst_18 = arith.constant 0.000000e+00 : f32
    %68 = vector.broadcast %cst_18 : f32 to vector<8x128xf32>
    %69 = arith.maximumf %67, %68 : vector<8x128xf32>
    %c5_19 = arith.constant 5 : index
    %70 = memref.load %arg3[%c5_19] : memref<16xf32, #tpu.memory_space<smem>>
    %71 = vector.broadcast %70 : f32 to vector<8x128xf32>
    %72 = arith.mulf %69, %71 : vector<8x128xf32>
    %73 = arith.addf %61, %72 : vector<8x128xf32>
    %c6 = arith.constant 6 : index
    %74 = memref.load %arg1[%c6] : memref<16xf32, #tpu.memory_space<smem>>
    %75 = vector.broadcast %74 : f32 to vector<8x128xf32>
    %76 = arith.mulf %0, %75 : vector<8x128xf32>
    %c6_20 = arith.constant 6 : index
    %77 = memref.load %arg2[%c6_20] : memref<16xf32, #tpu.memory_space<smem>>
    %78 = vector.broadcast %77 : f32 to vector<8x128xf32>
    %79 = arith.addf %76, %78 : vector<8x128xf32>
    %cst_21 = arith.constant 0.000000e+00 : f32
    %80 = vector.broadcast %cst_21 : f32 to vector<8x128xf32>
    %81 = arith.maximumf %79, %80 : vector<8x128xf32>
    %c6_22 = arith.constant 6 : index
    %82 = memref.load %arg3[%c6_22] : memref<16xf32, #tpu.memory_space<smem>>
    %83 = vector.broadcast %82 : f32 to vector<8x128xf32>
    %84 = arith.mulf %81, %83 : vector<8x128xf32>
    %85 = arith.addf %73, %84 : vector<8x128xf32>
    %c7 = arith.constant 7 : index
    %86 = memref.load %arg1[%c7] : memref<16xf32, #tpu.memory_space<smem>>
    %87 = vector.broadcast %86 : f32 to vector<8x128xf32>
    %88 = arith.mulf %0, %87 : vector<8x128xf32>
    %c7_23 = arith.constant 7 : index
    %89 = memref.load %arg2[%c7_23] : memref<16xf32, #tpu.memory_space<smem>>
    %90 = vector.broadcast %89 : f32 to vector<8x128xf32>
    %91 = arith.addf %88, %90 : vector<8x128xf32>
    %cst_24 = arith.constant 0.000000e+00 : f32
    %92 = vector.broadcast %cst_24 : f32 to vector<8x128xf32>
    %93 = arith.maximumf %91, %92 : vector<8x128xf32>
    %c7_25 = arith.constant 7 : index
    %94 = memref.load %arg3[%c7_25] : memref<16xf32, #tpu.memory_space<smem>>
    %95 = vector.broadcast %94 : f32 to vector<8x128xf32>
    %96 = arith.mulf %93, %95 : vector<8x128xf32>
    %97 = arith.addf %85, %96 : vector<8x128xf32>
    %c8 = arith.constant 8 : index
    %98 = memref.load %arg1[%c8] : memref<16xf32, #tpu.memory_space<smem>>
    %99 = vector.broadcast %98 : f32 to vector<8x128xf32>
    %100 = arith.mulf %0, %99 : vector<8x128xf32>
    %c8_26 = arith.constant 8 : index
    %101 = memref.load %arg2[%c8_26] : memref<16xf32, #tpu.memory_space<smem>>
    %102 = vector.broadcast %101 : f32 to vector<8x128xf32>
    %103 = arith.addf %100, %102 : vector<8x128xf32>
    %cst_27 = arith.constant 0.000000e+00 : f32
    %104 = vector.broadcast %cst_27 : f32 to vector<8x128xf32>
    %105 = arith.maximumf %103, %104 : vector<8x128xf32>
    %c8_28 = arith.constant 8 : index
    %106 = memref.load %arg3[%c8_28] : memref<16xf32, #tpu.memory_space<smem>>
    %107 = vector.broadcast %106 : f32 to vector<8x128xf32>
    %108 = arith.mulf %105, %107 : vector<8x128xf32>
    %109 = arith.addf %97, %108 : vector<8x128xf32>
    %c9 = arith.constant 9 : index
    %110 = memref.load %arg1[%c9] : memref<16xf32, #tpu.memory_space<smem>>
    %111 = vector.broadcast %110 : f32 to vector<8x128xf32>
    %112 = arith.mulf %0, %111 : vector<8x128xf32>
    %c9_29 = arith.constant 9 : index
    %113 = memref.load %arg2[%c9_29] : memref<16xf32, #tpu.memory_space<smem>>
    %114 = vector.broadcast %113 : f32 to vector<8x128xf32>
    %115 = arith.addf %112, %114 : vector<8x128xf32>
    %cst_30 = arith.constant 0.000000e+00 : f32
    %116 = vector.broadcast %cst_30 : f32 to vector<8x128xf32>
    %117 = arith.maximumf %115, %116 : vector<8x128xf32>
    %c9_31 = arith.constant 9 : index
    %118 = memref.load %arg3[%c9_31] : memref<16xf32, #tpu.memory_space<smem>>
    %119 = vector.broadcast %118 : f32 to vector<8x128xf32>
    %120 = arith.mulf %117, %119 : vector<8x128xf32>
    %121 = arith.addf %109, %120 : vector<8x128xf32>
    %c10 = arith.constant 10 : index
    %122 = memref.load %arg1[%c10] : memref<16xf32, #tpu.memory_space<smem>>
    %123 = vector.broadcast %122 : f32 to vector<8x128xf32>
    %124 = arith.mulf %0, %123 : vector<8x128xf32>
    %c10_32 = arith.constant 10 : index
    %125 = memref.load %arg2[%c10_32] : memref<16xf32, #tpu.memory_space<smem>>
    %126 = vector.broadcast %125 : f32 to vector<8x128xf32>
    %127 = arith.addf %124, %126 : vector<8x128xf32>
    %cst_33 = arith.constant 0.000000e+00 : f32
    %128 = vector.broadcast %cst_33 : f32 to vector<8x128xf32>
    %129 = arith.maximumf %127, %128 : vector<8x128xf32>
    %c10_34 = arith.constant 10 : index
    %130 = memref.load %arg3[%c10_34] : memref<16xf32, #tpu.memory_space<smem>>
    %131 = vector.broadcast %130 : f32 to vector<8x128xf32>
    %132 = arith.mulf %129, %131 : vector<8x128xf32>
    %133 = arith.addf %121, %132 : vector<8x128xf32>
    %c11 = arith.constant 11 : index
    %134 = memref.load %arg1[%c11] : memref<16xf32, #tpu.memory_space<smem>>
    %135 = vector.broadcast %134 : f32 to vector<8x128xf32>
    %136 = arith.mulf %0, %135 : vector<8x128xf32>
    %c11_35 = arith.constant 11 : index
    %137 = memref.load %arg2[%c11_35] : memref<16xf32, #tpu.memory_space<smem>>
    %138 = vector.broadcast %137 : f32 to vector<8x128xf32>
    %139 = arith.addf %136, %138 : vector<8x128xf32>
    %cst_36 = arith.constant 0.000000e+00 : f32
    %140 = vector.broadcast %cst_36 : f32 to vector<8x128xf32>
    %141 = arith.maximumf %139, %140 : vector<8x128xf32>
    %c11_37 = arith.constant 11 : index
    %142 = memref.load %arg3[%c11_37] : memref<16xf32, #tpu.memory_space<smem>>
    %143 = vector.broadcast %142 : f32 to vector<8x128xf32>
    %144 = arith.mulf %141, %143 : vector<8x128xf32>
    %145 = arith.addf %133, %144 : vector<8x128xf32>
    %c12 = arith.constant 12 : index
    %146 = memref.load %arg1[%c12] : memref<16xf32, #tpu.memory_space<smem>>
    %147 = vector.broadcast %146 : f32 to vector<8x128xf32>
    %148 = arith.mulf %0, %147 : vector<8x128xf32>
    %c12_38 = arith.constant 12 : index
    %149 = memref.load %arg2[%c12_38] : memref<16xf32, #tpu.memory_space<smem>>
    %150 = vector.broadcast %149 : f32 to vector<8x128xf32>
    %151 = arith.addf %148, %150 : vector<8x128xf32>
    %cst_39 = arith.constant 0.000000e+00 : f32
    %152 = vector.broadcast %cst_39 : f32 to vector<8x128xf32>
    %153 = arith.maximumf %151, %152 : vector<8x128xf32>
    %c12_40 = arith.constant 12 : index
    %154 = memref.load %arg3[%c12_40] : memref<16xf32, #tpu.memory_space<smem>>
    %155 = vector.broadcast %154 : f32 to vector<8x128xf32>
    %156 = arith.mulf %153, %155 : vector<8x128xf32>
    %157 = arith.addf %145, %156 : vector<8x128xf32>
    %c13 = arith.constant 13 : index
    %158 = memref.load %arg1[%c13] : memref<16xf32, #tpu.memory_space<smem>>
    %159 = vector.broadcast %158 : f32 to vector<8x128xf32>
    %160 = arith.mulf %0, %159 : vector<8x128xf32>
    %c13_41 = arith.constant 13 : index
    %161 = memref.load %arg2[%c13_41] : memref<16xf32, #tpu.memory_space<smem>>
    %162 = vector.broadcast %161 : f32 to vector<8x128xf32>
    %163 = arith.addf %160, %162 : vector<8x128xf32>
    %cst_42 = arith.constant 0.000000e+00 : f32
    %164 = vector.broadcast %cst_42 : f32 to vector<8x128xf32>
    %165 = arith.maximumf %163, %164 : vector<8x128xf32>
    %c13_43 = arith.constant 13 : index
    %166 = memref.load %arg3[%c13_43] : memref<16xf32, #tpu.memory_space<smem>>
    %167 = vector.broadcast %166 : f32 to vector<8x128xf32>
    %168 = arith.mulf %165, %167 : vector<8x128xf32>
    %169 = arith.addf %157, %168 : vector<8x128xf32>
    %c14 = arith.constant 14 : index
    %170 = memref.load %arg1[%c14] : memref<16xf32, #tpu.memory_space<smem>>
    %171 = vector.broadcast %170 : f32 to vector<8x128xf32>
    %172 = arith.mulf %0, %171 : vector<8x128xf32>
    %c14_44 = arith.constant 14 : index
    %173 = memref.load %arg2[%c14_44] : memref<16xf32, #tpu.memory_space<smem>>
    %174 = vector.broadcast %173 : f32 to vector<8x128xf32>
    %175 = arith.addf %172, %174 : vector<8x128xf32>
    %cst_45 = arith.constant 0.000000e+00 : f32
    %176 = vector.broadcast %cst_45 : f32 to vector<8x128xf32>
    %177 = arith.maximumf %175, %176 : vector<8x128xf32>
    %c14_46 = arith.constant 14 : index
    %178 = memref.load %arg3[%c14_46] : memref<16xf32, #tpu.memory_space<smem>>
    %179 = vector.broadcast %178 : f32 to vector<8x128xf32>
    %180 = arith.mulf %177, %179 : vector<8x128xf32>
    %181 = arith.addf %169, %180 : vector<8x128xf32>
    %c15 = arith.constant 15 : index
    %182 = memref.load %arg1[%c15] : memref<16xf32, #tpu.memory_space<smem>>
    %183 = vector.broadcast %182 : f32 to vector<8x128xf32>
    %184 = arith.mulf %0, %183 : vector<8x128xf32>
    %c15_47 = arith.constant 15 : index
    %185 = memref.load %arg2[%c15_47] : memref<16xf32, #tpu.memory_space<smem>>
    %186 = vector.broadcast %185 : f32 to vector<8x128xf32>
    %187 = arith.addf %184, %186 : vector<8x128xf32>
    %cst_48 = arith.constant 0.000000e+00 : f32
    %188 = vector.broadcast %cst_48 : f32 to vector<8x128xf32>
    %189 = arith.maximumf %187, %188 : vector<8x128xf32>
    %c15_49 = arith.constant 15 : index
    %190 = memref.load %arg3[%c15_49] : memref<16xf32, #tpu.memory_space<smem>>
    %191 = vector.broadcast %190 : f32 to vector<8x128xf32>
    %192 = arith.mulf %189, %191 : vector<8x128xf32>
    %193 = arith.addf %181, %192 : vector<8x128xf32>
    %c0_50 = arith.constant 0 : index
    %194 = memref.load %arg4[%c0_50] : memref<1xf32, #tpu.memory_space<smem>>
    %195 = vector.broadcast %194 : f32 to vector<8x128xf32>
    %196 = arith.addf %193, %195 : vector<8x128xf32>
    %c0_51 = arith.constant 0 : index
    %c0_52 = arith.constant 0 : index
    %197 = vector.load %arg6[%c0_51, %c0_52] : memref<8x128xf32, #tpu.memory_space<vmem>>, vector<8x128xf32>
    tpu.vector_store %arg6[%c0_51, %c0_52], %196 {strides = array<i32>} : memref<8x128xf32, #tpu.memory_space<vmem>>, vector<8x128xf32>,
    return
  }
  func.func @transform_0(%arg0: i32) -> i32 {
    %c0_i32 = arith.constant 0 : i32
    %c0_i32_0 = arith.constant 0 : i32
    return %c0_i32 : i32
  }
  func.func @transform_1(%arg0: i32) -> i32 {
    %c0_i32 = arith.constant 0 : i32
    %c0_i32_0 = arith.constant 0 : i32
    return %c0_i32 : i32
  }
  func.func @transform_2(%arg0: i32) -> i32 {
    %c0_i32 = arith.constant 0 : i32
    %c0_i32_0 = arith.constant 0 : i32
    return %c0_i32 : i32
  }
  func.func @transform_3(%arg0: i32) -> i32 {
    %c0_i32 = arith.constant 0 : i32
    %c0_i32_0 = arith.constant 0 : i32
    return %c0_i32 : i32
  }
  func.func @transform_4(%arg0: i32) -> (i32, i32) {
    %c0_i32 = arith.constant 0 : i32
    %c0_i32_0 = arith.constant 0 : i32
    return %arg0, %c0_i32 : i32, i32
  }
  func.func @transform_5(%arg0: i32) -> (i32, i32) {
    %c0_i32 = arith.constant 0 : i32
    %c0_i32_0 = arith.constant 0 : i32
    return %arg0, %c0_i32 : i32, i32
  }
}

</mosaic_0001>

<llo_original>
// kernel: tpu_custom_call.1
$region0: #{tpu_custom_call.1}
  #allocation0 [shape = 'u32[]', space=smem, size = 0x4, offset = 0x4, fixed_abs, tag = 'smem constant byte address 0x4 - core index']
  #allocation1 [shape = 'u32[144,128]{1,0:T(1,128)}', space=vmem, size = 0x12000, scoped, tag = 'internal scratch']
  #allocation2 [shape = 'f32[1]{0:T(128)S(6)}', space=smem, size = 0x200, scoped, tag = 'scoped memory for tpu_custom_call.1']
  %s0 = inlined_call_operand.vmem [shape: f32[16], index: 0, kind: input, shape index: {}]
  %s1 = inlined_call_operand.vmem [shape: f32[16], index: 1, kind: input, shape index: {}]
  %s2 = inlined_call_operand.vmem [shape: f32[16], index: 2, kind: input, shape index: {}]
  %s3 = inlined_call_operand.<no memory space> [shape: f32[1], index: 3, kind: input, shape index: {}]
  %s4 = inlined_call_operand.vmem [shape: f32[8,128], index: 4, kind: input, shape index: {}]
  %s5 = inlined_call_operand.hbm [shape: f32[8,128], index: 5, kind: output, shape index: {}]
  %s6 = sld [smem:[#allocation0]]
  $region42: #{tpu_custom_call.1} parent=0
    _
  %s8 = ssub.s32 1, %s6
  %s9 = scalar_select 0, %s8, %s6
  %10 = sst [smem:[#allocation2]] %s3
  $region1: #{tpu_custom_call.1} parent=0
    #allocation3 [shape = 'u8[512]{0}', space=smem, size = 0x200, scoped, tag = 'input window, operand 0, single buffered']
    #allocation4 [shape = 's32[1]{0}', space=sflag, size = 0x4, scoped, tag = 'scoped memory for tpu_custom_call.1']
    #allocation5 [shape = 's32[1]{0}', space=sflag, size = 0x4, scoped, tag = 'scoped memory for tpu_custom_call.1']
    #allocation6 [shape = 'u8[512]{0}', space=smem, size = 0x200, scoped, tag = 'input window, operand 1, single buffered']
    #allocation7 [shape = 's32[1]{0}', space=sflag, size = 0x4, scoped, tag = 'scoped memory for tpu_custom_call.1']
    #allocation8 [shape = 'u8[512]{0}', space=smem, size = 0x200, scoped, tag = 'input window, operand 2, single buffered']
    #allocation9 [shape = 'u8[4096]{0}', space=vmem, size = 0x1000, scoped, tag = 'output window, operand 0, single buffered']
    %11 = vsyncpa [#allocation5], 0
    %12 = vsyncpa [#allocation7], 0
    %13 = vsyncpa [#allocation4], 0
    // Predicated region
    $region2: #{tpu_custom_call.1} parent=1 // pred_check
      _
    $region3: #{tpu_custom_call.1} parent=1 // pred_check_branch
      %15 = sbr.rel (0) target = $region5
    $region4: #{tpu_custom_call.1} parent=1 // pred_region
      %s17 = ssub.s32 16, 16
      %18 = vsyncadd [#allocation5], %s17
      %s20 = sshll.u32 %s0, 4
      %s21 = int_to_ptr.vmem [resolvable:$true] %s20
      %23 = dma.vmem_to_smem %s21, 16, [#allocation3], [#allocation5]
    $region5: #{tpu_custom_call.1} parent=1 // pred_fallthru
      _
    // Predicated region
    $region6: #{tpu_custom_call.1} parent=1 // pred_check
      _
    $region7: #{tpu_custom_call.1} parent=1 // pred_check_branch
      %25 = sbr.rel (0) target = $region9
    $region8: #{tpu_custom_call.1} parent=1 // pred_region
      %s27 = ssub.s32 16, 16
      %28 = vsyncadd [#allocation7], %s27
      %s30 = sshll.u32 %s1, 4
      %s31 = int_to_ptr.vmem [resolvable:$true] %s30
      %33 = dma.vmem_to_smem %s31, 16, [#allocation6], [#allocation7]
    $region9: #{tpu_custom_call.1} parent=1 // pred_fallthru
      _
    // Predicated region
    $region10: #{tpu_custom_call.1} parent=1 // pred_check
      _
    $region11: #{tpu_custom_call.1} parent=1 // pred_check_branch
      %35 = sbr.rel (0) target = $region13
    $region12: #{tpu_custom_call.1} parent=1 // pred_region
      %s37 = ssub.s32 16, 16
      %38 = vsyncadd [#allocation7], %s37
      %s40 = sshll.u32 %s2, 4
      %s41 = int_to_ptr.vmem [resolvable:$true] %s40
      %43 = dma.vmem_to_smem %s41, 16, [#allocation8], [#allocation7]
    $region13: #{tpu_custom_call.1} parent=1 // pred_fallthru
      _
    // Predicated region
    $region14: #{tpu_custom_call.1} parent=1 // pred_check
      _
    $region15: #{tpu_custom_call.1} parent=1 // pred_check_branch
      %45 = sbr.rel (0) target = $region17
    $region16: #{tpu_custom_call.1} parent=1 // pred_region
      _
    $region17: #{tpu_custom_call.1} parent=1 // pred_fallthru
      _
    // Predicated region
    $region18: #{tpu_custom_call.1} parent=1 // pred_check
      _
    $region19: #{tpu_custom_call.1} parent=1 // pred_check_branch
      %47 = sbr.rel (0) target = $region21
    $region20: #{tpu_custom_call.1} parent=1 // pred_region
      _
    $region21: #{tpu_custom_call.1} parent=1 // pred_fallthru
      _
    // Predicated region
    $region22: #{tpu_custom_call.1} parent=1 // pred_check
      _
    $region23: #{tpu_custom_call.1} parent=1 // pred_check_branch
      %49 = sbr.rel (0) target = $region25
    $region24: #{tpu_custom_call.1} parent=1 // pred_region
      %50 = dma.done [#allocation5], 16
    $region25: #{tpu_custom_call.1} parent=1 // pred_fallthru
      _
    // Predicated region
    $region26: #{tpu_custom_call.1} parent=1 // pred_check
      _
    $region27: #{tpu_custom_call.1} parent=1 // pred_check_branch
      %52 = sbr.rel (0) target = $region29
    $region28: #{tpu_custom_call.1} parent=1 // pred_region
      %53 = dma.done [#allocation7], 16
    $region29: #{tpu_custom_call.1} parent=1 // pred_fallthru
      _
    // Predicated region
    $region30: #{tpu_custom_call.1} parent=1 // pred_check
      _
    $region31: #{tpu_custom_call.1} parent=1 // pred_check_branch
      %55 = sbr.rel (0) target = $region33
    $region32: #{tpu_custom_call.1} parent=1 // pred_region
      %56 = dma.done [#allocation7], 16
    $region33: #{tpu_custom_call.1} parent=1 // pred_fallthru
      _
    %57 = sfence
    %v58 = vld [vmem:[%s4] sm:$0xff]
    %s59 = sld [smem:[#allocation3]]
    %v60 = vstv %s59
    %v61 = vmul.f32 %v58, %v60
    %s62 = sld [smem:[#allocation6]]
    %v63 = vstv %s62
    %v64 = vadd.f32 %v61, %v63
    %v65 = vmax.f32 %v64, 0.0
    %s66 = sld [smem:[#allocation8]]
    %v67 = vstv %s66
    %v68 = vmul.f32 %v65, %v67
    %v69 = vadd.f32 %v68, 0.0
    %s70 = sld [smem:[#allocation3 + $0x1]]
    %v71 = vstv %s70
    %v72 = vmul.f32 %v58, %v71
    %s73 = sld [smem:[#allocation6 + $0x1]]
    %v74 = vstv %s73
    %v75 = vadd.f32 %v72, %v74
    %v76 = vmax.f32 %v75, 0.0
    %s77 = sld [smem:[#allocation8 + $0x1]]
    %v78 = vstv %s77
    %v79 = vmul.f32 %v76, %v78
    %v80 = vadd.f32 %v69, %v79
    %s81 = sld [smem:[#allocation3 + $0x2]]
    %v82 = vstv %s81
    %v83 = vmul.f32 %v58, %v82
    %s84 = sld [smem:[#allocation6 + $0x2]]
    %v85 = vstv %s84
    %v86 = vadd.f32 %v83, %v85
    %v87 = vmax.f32 %v86, 0.0
    %s88 = sld [smem:[#allocation8 + $0x2]]
    %v89 = vstv %s88
    %v90 = vmul.f32 %v87, %v89
    %v91 = vadd.f32 %v80, %v90
    %s92 = sld [smem:[#allocation3 + $0x3]]
    %v93 = vstv %s92
    %v94 = vmul.f32 %v58, %v93
    %s95 = sld [smem:[#allocation6 + $0x3]]
    %v96 = vstv %s95
    %v97 = vadd.f32 %v94, %v96
    %v98 = vmax.f32 %v97, 0.0
    %s99 = sld [smem:[#allocation8 + $0x3]]
    %v100 = vstv %s99
    %v101 = vmul.f32 %v98, %v100
    %v102 = vadd.f32 %v91, %v101
    %s103 = sld [smem:[#allocation3 + $0x4]]
    %v104 = vstv %s103
    %v105 = vmul.f32 %v58, %v104
    %s106 = sld [smem:[#allocation6 + $0x4]]
    %v107 = vstv %s106
    %v108 = vadd.f32 %v105, %v107
    %v109 = vmax.f32 %v108, 0.0
    %s110 = sld [smem:[#allocation8 + $0x4]]
    %v111 = vstv %s110
    %v112 = vmul.f32 %v109, %v111
    %v113 = vadd.f32 %v102, %v112
    %s114 = sld [smem:[#allocation3 + $0x5]]
    %v115 = vstv %s114
    %v116 = vmul.f32 %v58, %v115
    %s117 = sld [smem:[#allocation6 + $0x5]]
    %v118 = vstv %s117
    %v119 = vadd.f32 %v116, %v118
    %v120 = vmax.f32 %v119, 0.0
    %s121 = sld [smem:[#allocation8 + $0x5]]
    %v122 = vstv %s121
    %v123 = vmul.f32 %v120, %v122
    %v124 = vadd.f32 %v113, %v123
    %s125 = sld [smem:[#allocation3 + $0x6]]
    %v126 = vstv %s125
    %v127 = vmul.f32 %v58, %v126
    %s128 = sld [smem:[#allocation6 + $0x6]]
    %v129 = vstv %s128
    %v130 = vadd.f32 %v127, %v129
    %v131 = vmax.f32 %v130, 0.0
    %s132 = sld [smem:[#allocation8 + $0x6]]
    %v133 = vstv %s132
    %v134 = vmul.f32 %v131, %v133
    %v135 = vadd.f32 %v124, %v134
    %s136 = sld [smem:[#allocation3 + $0x7]]
    %v137 = vstv %s136
    %v138 = vmul.f32 %v58, %v137
    %s139 = sld [smem:[#allocation6 + $0x7]]
    %v140 = vstv %s139
    %v141 = vadd.f32 %v138, %v140
    %v142 = vmax.f32 %v141, 0.0
    %s143 = sld [smem:[#allocation8 + $0x7]]
    %v144 = vstv %s143
    %v145 = vmul.f32 %v142, %v144
    %v146 = vadd.f32 %v135, %v145
    %s147 = sld [smem:[#allocation3 + $0x8]]
    %v148 = vstv %s147
    %v149 = vmul.f32 %v58, %v148
    %s150 = sld [smem:[#allocation6 + $0x8]]
    %v151 = vstv %s150
    %v152 = vadd.f32 %v149, %v151
    %v153 = vmax.f32 %v152, 0.0
    %s154 = sld [smem:[#allocation8 + $0x8]]
    %v155 = vstv %s154
    %v156 = vmul.f32 %v153, %v155
    %v157 = vadd.f32 %v146, %v156
    %s158 = sld [smem:[#allocation3 + $0x9]]
    %v159 = vstv %s158
    %v160 = vmul.f32 %v58, %v159
    %s161 = sld [smem:[#allocation6 + $0x9]]
    %v162 = vstv %s161
    %v163 = vadd.f32 %v160, %v162
    %v164 = vmax.f32 %v163, 0.0
    %s165 = sld [smem:[#allocation8 + $0x9]]
    %v166 = vstv %s165
    %v167 = vmul.f32 %v164, %v166
    %v168 = vadd.f32 %v157, %v167
    %s169 = sld [smem:[#allocation3 + $0xa]]
    %v170 = vstv %s169
    %v171 = vmul.f32 %v58, %v170
    %s172 = sld [smem:[#allocation6 + $0xa]]
    %v173 = vstv %s172
    %v174 = vadd.f32 %v171, %v173
    %v175 = vmax.f32 %v174, 0.0
    %s176 = sld [smem:[#allocation8 + $0xa]]
    %v177 = vstv %s176
    %v178 = vmul.f32 %v175, %v177
    %v179 = vadd.f32 %v168, %v178
    %s180 = sld [smem:[#allocation3 + $0xb]]
    %v181 = vstv %s180
    %v182 = vmul.f32 %v58, %v181
    %s183 = sld [smem:[#allocation6 + $0xb]]
    %v184 = vstv %s183
    %v185 = vadd.f32 %v182, %v184
    %v186 = vmax.f32 %v185, 0.0
    %s187 = sld [smem:[#allocation8 + $0xb]]
    %v188 = vstv %s187
    %v189 = vmul.f32 %v186, %v188
    %v190 = vadd.f32 %v179, %v189
    %s191 = sld [smem:[#allocation3 + $0xc]]
    %v192 = vstv %s191
    %v193 = vmul.f32 %v58, %v192
    %s194 = sld [smem:[#allocation6 + $0xc]]
    %v195 = vstv %s194
    %v196 = vadd.f32 %v193, %v195
    %v197 = vmax.f32 %v196, 0.0
    %s198 = sld [smem:[#allocation8 + $0xc]]
    %v199 = vstv %s198
    %v200 = vmul.f32 %v197, %v199
    %v201 = vadd.f32 %v190, %v200
    %s202 = sld [smem:[#allocation3 + $0xd]]
    %v203 = vstv %s202
    %v204 = vmul.f32 %v58, %v203
    %s205 = sld [smem:[#allocation6 + $0xd]]
    %v206 = vstv %s205
    %v207 = vadd.f32 %v204, %v206
    %v208 = vmax.f32 %v207, 0.0
    %s209 = sld [smem:[#allocation8 + $0xd]]
    %v210 = vstv %s209
    %v211 = vmul.f32 %v208, %v210
    %v212 = vadd.f32 %v201, %v211
    %s213 = sld [smem:[#allocation3 + $0xe]]
    %v214 = vstv %s213
    %v215 = vmul.f32 %v58, %v214
    %s216 = sld [smem:[#allocation6 + $0xe]]
    %v217 = vstv %s216
    %v218 = vadd.f32 %v215, %v217
    %v219 = vmax.f32 %v218, 0.0
    %s220 = sld [smem:[#allocation8 + $0xe]]
    %v221 = vstv %s220
    %v222 = vmul.f32 %v219, %v221
    %v223 = vadd.f32 %v212, %v222
    %s224 = sld [smem:[#allocation3 + $0xf]]
    %v225 = vstv %s224
    %v226 = vmul.f32 %v58, %v225
    %s227 = sld [smem:[#allocation6 + $0xf]]
    %v228 = vstv %s227
    %v229 = vadd.f32 %v226, %v228
    %v230 = vmax.f32 %v229, 0.0
    %s231 = sld [smem:[#allocation8 + $0xf]]
    %v232 = vstv %s231
    %v233 = vmul.f32 %v230, %v232
    %v234 = vadd.f32 %v223, %v233
    %s235 = sld [smem:[#allocation2]]
    %v236 = vstv %s235
    %v237 = vadd.f32 %v234, %v236
    %238 = vst [vmem:[#allocation9] sm:$0xff] %v237
    // Predicated region
    $region34: #{tpu_custom_call.1} parent=1 // pred_check
      _
    $region35: #{tpu_custom_call.1} parent=1 // pred_check_branch
      %240 = sbr.rel (0) target = $region37
    $region36: #{tpu_custom_call.1} parent=1 // pred_region
      %s242 = ssub.s32 128, 128
      %243 = vsyncadd [#allocation4], %s242
      %s245 = sshll.u32 [#allocation9], 4
      %s246 = int_to_ptr.vmem [resolvable:$true] %s245
      %248 = dma.vmem_to_hbm [thread:$0]  %s246, 128, %s5, [#allocation4]
    $region37: #{tpu_custom_call.1} parent=1 // pred_fallthru
      _
    // Predicated region
    $region38: #{tpu_custom_call.1} parent=1 // pred_check
      _
    $region39: #{tpu_custom_call.1} parent=1 // pred_check_branch
      %250 = sbr.rel (0) target = $region41
    $region40: #{tpu_custom_call.1} parent=1 // pred_region
      %251 = dma.done [#allocation4], 128
    $region41: #{tpu_custom_call.1} parent=1 // pred_fallthru
      _
    %252 = vsyncpa [#allocation4], 1
    %253 = vsyncpa [#allocation5], 1
    %254 = vsyncpa [#allocation7], 1

</llo_original>
